<compile_context>
chip_gen: v5e
topology: v5e:2x2
jax: 0.10.0
libtpu: 0.0.40
codegen_flags: <defaults>
</compile_context>

<pallas_src>
import jax
import jax.numpy as jnp
from jax.experimental import pallas as pl
from jax.experimental.pallas import tpu as pltpu


def _make_rmsnorm_kernel(eps):
    def kernel(x_ref, w_ref, o_ref):
        # x_ref: (tT, H), w_ref: (1, H), o_ref: (tT, H)
        x32 = x_ref[...].astype(jnp.float32)                      # torch .to(float32)
        var = jnp.mean(x32 * x32, axis=-1, keepdims=True)         # (tT, 1), XLU reduce
        inv = jax.lax.rsqrt(var + eps)                            # EUP
        # Re-read the (VMEM-resident) block instead of reusing the big f32
        # temporary: keeps the live f32 footprint to one streaming pass.
        normed = (x_ref[...].astype(jnp.float32) * inv).astype(x_ref.dtype)
        # weight * normed promotes exactly like torch; o_ref dtype matches.
        o_ref[...] = w_ref[...] * normed
    return kernel


def _vmem_capacity_bytes():
    """Physical VMEM of the current part; falls back to 128 MiB."""
    try:
        info = pltpu.get_tpu_info()
        cap = getattr(info, "vmem_capacity_bytes", None)
        if cap:
            return int(cap)
    except Exception:
        pass
    return 128 << 20


def _sublane_align(itemsize):
    # Rows per packed sublane tile: f32 -> 8, bf16/f16 -> 16, int8/fp8 -> 32.
    if itemsize >= 4:
        return 8
    if itemsize == 2:
        return 16
    return 32


def _choose_block_rows(T, H, in_itemsize, out_itemsize, block_budget_bytes):
    """Largest sublane-aligned row tile whose buffered bytes fit the budget."""
    align = _sublane_align(in_itemsize)
    if T <= align:
        return T  # full extent is always a legal block shape
    # Buffered bytes per row of the tile:
    #   2x double-buffered input + 2x double-buffered output + f32 temporary.
    per_row = H * (2 * in_itemsize + 2 * out_itemsize + 4)
    rows = min(T, 1024, max(align, block_budget_bytes // max(1, per_row)))
    rows -= rows % align
    return max(align, rows)


def mixtral_rmsnorm(hidden_states, weight, eps=1e-6):
    """hidden_states: (..., H); weight: (H,). Matches MixtralRMSNorm.forward."""
    orig_shape = hidden_states.shape
    H = orig_shape[-1]
    T = 1
    for d in orig_shape[:-1]:
        T *= d

    x = hidden_states.reshape(T, H)
    w = weight.reshape(1, H)

    # Torch promotion: weight * normed(input_dtype).
    # NOTE: if weight is f32 and activations bf16 this doubles write bytes; the
    # model-level fix is to store weight in the activation dtype, but we keep
    # exact torch semantics here and simply budget for the larger output.
    out_dtype = jnp.promote_types(hidden_states.dtype, weight.dtype)
    in_itemsize = jnp.dtype(hidden_states.dtype).itemsize
    out_itemsize = jnp.dtype(out_dtype).itemsize

    # Per-generation VMEM picture: raise the scoped limit above the 16/32 MiB
    # defaults, but stay well inside physical VMEM (64 MiB on v7x, 128 on
    # v5e/v6e). Budget ~half the limit for the buffered block bytes so compiler
    # temporaries / weight double-buffer have headroom.
    phys_vmem = _vmem_capacity_bytes()
    vmem_limit = min(phys_vmem // 2, 64 << 20)
    block_budget = vmem_limit // 2

    rows = _choose_block_rows(T, H, in_itemsize, out_itemsize, block_budget)
    grid = (pl.cdiv(T, rows),)

    in_bytes = T * H * in_itemsize
    out_bytes = T * H * out_itemsize
    w_bytes = H * jnp.dtype(weight.dtype).itemsize
    cost = pl.CostEstimate(
        flops=5 * T * H,            # square, reduce-add, scale, weight-mul (approx)
        transcendentals=T,          # one rsqrt per row
        bytes_accessed=in_bytes + out_bytes + w_bytes,
    )

    out = pl.pallas_call(
        _make_rmsnorm_kernel(float(eps)),
        out_shape=jax.ShapeDtypeStruct((T, H), out_dtype),
        grid=grid,
        in_specs=[
            pl.BlockSpec((rows, H), lambda i: (i, 0)),
            pl.BlockSpec((1, H), lambda i: (0, 0)),   # resident: constant block index
        ],
        out_specs=pl.BlockSpec((rows, H), lambda i: (i, 0)),
        compiler_params=pltpu.CompilerParams(
            dimension_semantics=("parallel",),
            vmem_limit_bytes=int(vmem_limit),
        ),
        cost_estimate=cost,
    )(x, w)

    return out.reshape(orig_shape[:-1] + (H,))


def _reference(hidden_states, weight, eps=1e-6):
    x = hidden_states.astype(jnp.float32)
    var = jnp.mean(x * x, axis=-1, keepdims=True)
    normed = (x * jax.lax.rsqrt(var + eps)).astype(hidden_states.dtype)
    return weight * normed


if __name__ == "__main__":
    # Small shapes consistent with the module: (batch, seq, hidden).
    batch, seq, hidden_size = 2, 16, 128   # hidden multiple of 128 -> lane-dense
    eps = 1e-6

    key = jax.random.PRNGKey(0)
    kx, _ = jax.random.split(key)
    hidden_states = jax.random.normal(kx, (batch, seq, hidden_size), jnp.float32)
    weight = jnp.ones((hidden_size,), jnp.float32)  # nn.Parameter(torch.ones(hidden_size))

    # f32 path
    out = jax.block_until_ready(mixtral_rmsnorm(hidden_states, weight, eps))
    ref = _reference(hidden_states, weight, eps)
    assert out.shape == ref.shape == (batch, seq, hidden_size)
    assert out.dtype == ref.dtype
    assert jnp.allclose(out, ref, atol=1e-5, rtol=1e-5), "f32 mismatch vs reference"

    # bf16 input path (torch: upcast -> normalize -> cast back -> weight mul)
    hs_bf16 = hidden_states.astype(jnp.bfloat16)
    out_bf16 = jax.block_until_ready(mixtral_rmsnorm(hs_bf16, weight, eps))
    ref_bf16 = _reference(hs_bf16, weight, eps)
    assert out_bf16.dtype == ref_bf16.dtype
    assert jnp.allclose(out_bf16.astype(jnp.float32),
                        ref_bf16.astype(jnp.float32), atol=2e-2, rtol=2e-2), \
        "bf16 mismatch vs reference"

    # bf16 weight + bf16 input path (lane-dense bf16 output, 16-row alignment)
    w_bf16 = weight.astype(jnp.bfloat16)
    out_bb = jax.block_until_ready(mixtral_rmsnorm(hs_bf16, w_bf16, eps))
    ref_bb = _reference(hs_bf16, w_bf16, eps)
    assert out_bb.dtype == ref_bb.dtype
    assert jnp.allclose(out_bb.astype(jnp.float32),
                        ref_bb.astype(jnp.float32), atol=2e-2, rtol=2e-2), \
        "bf16/bf16 mismatch vs reference"

    # TODO(synk): xp.trace_me('MixtralRMSNorm') is a profiler annotation with no
    # Pallas equivalent; omitted.
    print("KERNEL_OK")
</pallas_src>

<mosaic_0001>
module attributes {stable_mosaic.version = 11 : i64} {
  func.func @kernel(%arg0: i32, %arg1: memref<32x128xf32, #tpu.memory_space<vmem>>, %arg2: memref<1x128xf32, #tpu.memory_space<vmem>>, %arg3: memref<32x128xf32, #tpu.memory_space<vmem>>) attributes {dimension_semantics = [#tpu.dimension_semantics<parallel>], iteration_bounds = array<i64: 1>, scalar_prefetch = 0 : i64, scratch_operands = 0 : i64, tpu.core_type = #tpu.core_type<tc>, window_params = [{transform_indices = @transform_0, window_bounds = array<i64: 32, 128>}, {pipeline_mode = #tpu.pipeline_mode<synchronous>, transform_indices = @transform_1, window_bounds = array<i64: 1, 128>}, {transform_indices = @transform_2, window_bounds = array<i64: 32, 128>}]} {
    %c0 = arith.constant 0 : index
    %c0_0 = arith.constant 0 : index
    %0 = vector.load %arg1[%c0, %c0_0] : memref<32x128xf32, #tpu.memory_space<vmem>>, vector<32x128xf32>
    %1 = arith.mulf %0, %0 : vector<32x128xf32>
    %cst = arith.constant dense<0.000000e+00> : vector<32xf32>
    %2 = vector.multi_reduction <add>, %1, %cst [1] : vector<32x128xf32> to vector<32xf32>
    %3 = vector.shape_cast %2 : vector<32xf32> to vector<32x1xf32>
    %cst_1 = arith.constant 1.280000e+02 : f32
    %4 = vector.broadcast %cst_1 : f32 to vector<32x1xf32>
    %5 = arith.divf %3, %4 : vector<32x1xf32>
    %cst_2 = arith.constant 9.99999997E-7 : f32
    %6 = vector.broadcast %cst_2 : f32 to vector<32x1xf32>
    %7 = arith.addf %5, %6 : vector<32x1xf32>
    %8 = math.rsqrt %7 : vector<32x1xf32>
    %c0_3 = arith.constant 0 : index
    %c0_4 = arith.constant 0 : index
    %9 = vector.load %arg1[%c0_3, %c0_4] : memref<32x128xf32, #tpu.memory_space<vmem>>, vector<32x128xf32>
    %10 = vector.broadcast %8 : vector<32x1xf32> to vector<32x128xf32>
    %11 = arith.mulf %9, %10 : vector<32x128xf32>
    %c0_5 = arith.constant 0 : index
    %c0_6 = arith.constant 0 : index
    %12 = vector.load %arg2[%c0_5, %c0_6] : memref<1x128xf32, #tpu.memory_space<vmem>>, vector<1x128xf32>
    %13 = vector.broadcast %12 : vector<1x128xf32> to vector<32x128xf32>
    %14 = arith.mulf %13, %11 : vector<32x128xf32>
    %c0_7 = arith.constant 0 : index
    %c0_8 = arith.constant 0 : index
    %15 = vector.load %arg3[%c0_7, %c0_8] : memref<32x128xf32, #tpu.memory_space<vmem>>, vector<32x128xf32>
    tpu.vector_store %arg3[%c0_7, %c0_8], %14 {strides = array<i32>} : memref<32x128xf32, #tpu.memory_space<vmem>>, vector<32x128xf32>,
    return
  }
  func.func @transform_0(%arg0: i32) -> (i32, i32) {
    %c0_i32 = arith.constant 0 : i32
    %c0_i32_0 = arith.constant 0 : i32
    return %arg0, %c0_i32 : i32, i32
  }
  func.func @transform_1(%arg0: i32) -> (i32, i32) {
    %c0_i32 = arith.constant 0 : i32
    %c0_i32_0 = arith.constant 0 : i32
    %c0_i32_1 = arith.constant 0 : i32
    return %c0_i32, %c0_i32_0 : i32, i32
  }
  func.func @transform_2(%arg0: i32) -> (i32, i32) {
    %c0_i32 = arith.constant 0 : i32
    %c0_i32_0 = arith.constant 0 : i32
    return %arg0, %c0_i32 : i32, i32
  }
}

</mosaic_0001>

<llo_original>
// kernel: tpu_custom_call.1
$region0: #{tpu_custom_call.1}
  #allocation0 [shape = 'u32[]', space=smem, size = 0x4, offset = 0x4, fixed_abs, tag = 'smem constant byte address 0x4 - core index']
  #allocation1 [shape = 'u32[72,128]{1,0:T(1,128)}', space=vmem, size = 0x9000, scoped, tag = 'internal scratch']
  %s0 = inlined_call_operand.hbm [shape: f32[32,128], index: 0, kind: input, shape index: {}]
  %s1 = inlined_call_operand.hbm [shape: f32[1,128], index: 1, kind: input, shape index: {}]
  %s2 = inlined_call_operand.hbm [shape: f32[32,128], index: 2, kind: output, shape index: {}]
  %s3 = sld [smem:[#allocation0]]
  $region26: #{tpu_custom_call.1} parent=0
    _
  %s5 = ssub.s32 1, %s3
  %s6 = scalar_select 0, %s5, %s3
  $region1: #{tpu_custom_call.1} parent=0
    #allocation2 [shape = 'u8[16384]{0}', space=vmem, size = 0x4000, scoped, tag = 'input window, operand 0, single buffered']
    #allocation3 [shape = 's32[1]{0}', space=sflag, size = 0x4, scoped, tag = 'scoped memory for tpu_custom_call.1']
    #allocation4 [shape = 's32[1]{0}', space=sflag, size = 0x4, scoped, tag = 'scoped memory for tpu_custom_call.1']
    #allocation5 [shape = 'u8[512]{0}', space=vmem, size = 0x400, scoped, tag = 'input window, operand 1, single buffered']
    #allocation6 [shape = 's32[1]{0}', space=sflag, size = 0x4, scoped, tag = 'scoped memory for tpu_custom_call.1']
    #allocation7 [shape = 'u8[16384]{0}', space=vmem, size = 0x4000, scoped, tag = 'output window, operand 0, single buffered']
    %7 = vsyncpa [#allocation3], 0
    %8 = vsyncpa [#allocation6], 0
    %9 = vsyncpa [#allocation4], 0
    // Predicated region
    $region2: #{tpu_custom_call.1} parent=1 // pred_check
      _
    $region3: #{tpu_custom_call.1} parent=1 // pred_check_branch
      %11 = sbr.rel (0) target = $region5
    $region4: #{tpu_custom_call.1} parent=1 // pred_region
      %13 = vsyncadd [#allocation3], 0
      %s14 = sshll.u32 %s0, 4
      %s15 = int_to_ptr.hbm [resolvable:$true] %s14
      %s16 = sshll.u32 [#allocation2], 4
      %s17 = int_to_ptr.vmem [resolvable:$true] %s16
      %22 = dma.hbm_to_vmem [thread:$0]  %s15, 512, %s17, [#allocation3], 128, 128, 8
    $region5: #{tpu_custom_call.1} parent=1 // pred_fallthru
      _
    // Predicated region
    $region6: #{tpu_custom_call.1} parent=1 // pred_check
      _
    $region7: #{tpu_custom_call.1} parent=1 // pred_check_branch
      %24 = sbr.rel (0) target = $region9
    $region8: #{tpu_custom_call.1} parent=1 // pred_region
      %26 = vsyncadd [#allocation6], 0
      %s28 = sshll.u32 %s1, 4
      %s29 = int_to_ptr.hbm [resolvable:$true] %s28
      %s30 = sshll.u32 [#allocation5], 4
      %s31 = int_to_ptr.vmem [resolvable:$true] %s30
      %33 = dma.hbm_to_vmem [thread:$0]  %s29, 16, %s31, [#allocation6]
    $region9: #{tpu_custom_call.1} parent=1 // pred_fallthru
      _
    // Predicated region
    $region10: #{tpu_custom_call.1} parent=1 // pred_check
      _
    $region11: #{tpu_custom_call.1} parent=1 // pred_check_branch
      %35 = sbr.rel (0) target = $region13
    $region12: #{tpu_custom_call.1} parent=1 // pred_region
      %37 = dma.done [#allocation3], 512
    $region13: #{tpu_custom_call.1} parent=1 // pred_fallthru
      _
    // Predicated region
    $region14: #{tpu_custom_call.1} parent=1 // pred_check
      _
    $region15: #{tpu_custom_call.1} parent=1 // pred_check_branch
      %39 = sbr.rel (0) target = $region17
    $region16: #{tpu_custom_call.1} parent=1 // pred_region
      %41 = dma.done [#allocation6], 16
    $region17: #{tpu_custom_call.1} parent=1 // pred_fallthru
      _
    %v42 = vld [vmem:[#allocation2] sm:$0xff]
    %v43 = vld [vmem:[#allocation2 + $0x8] sm:$0xff]
    %v44 = vld [vmem:[#allocation2 + $0x10] sm:$0xff]
    %v45 = vld [vmem:[#allocation2 + $0x18] sm:$0xff]
    %v46 = vmul.f32 %v42, %v42
    %v47 = vmul.f32 %v43, %v43
    %v48 = vmul.f32 %v44, %v44
    %v49 = vmul.f32 %v45, %v45
    %50 = vadd.xlane.f32.xlu0 %v46
    %v51 = vpop.xlane.xlu0 %50
    %52 = vadd.xlane.f32.xlu0 %v47
    %v53 = vpop.xlane.xlu0 %52
    %54 = vadd.xlane.f32.xlu0 %v48
    %v55 = vpop.xlane.xlu0 %54
    %56 = vadd.xlane.f32.xlu0 %v49
    %v57 = vpop.xlane.xlu0 %56
    %v58 = vrcp.pop 128.0
    %v59 = vmul.f32 128.0, %v58
    %v60 = vsub.f32 1.0, %v59
    %v61 = vmul.f32 %v58, %v60
    %v62 = vadd.f32 %v58, %v61
    %vm63 = vweird.f32 %v58
    %v64 = vsel %vm63, %v58, %v62
    %v65 = vmul.f32 %v51, %v64
    %v66 = vmul.f32 %v53, %v64
    %v67 = vmul.f32 %v55, %v64
    %v68 = vmul.f32 %v57, %v64
    %v69 = vadd.f32 %v65, 1e-06
    %v70 = vadd.f32 %v66, 1e-06
    %v71 = vadd.f32 %v67, 1e-06
    %v72 = vadd.f32 %v68, 1e-06
    %v73 = vrsqrt.pop %v69
    %v74 = vmul.f32 %v73, %v69
    %v75 = vmul.f32 %v74, %v73
    %v76 = vmul.f32 0.5, %v75
    %v77 = vsub.f32 1.5, %v76
    %v78 = vmul.f32 %v73, %v77
    %vm79 = vweird.f32 %v69
    %vm80 = vweird.f32 %v73
    %vm81 = vmor %vm79, %vm80
    %v82 = vsel %vm81, %v73, %v78
    %v83 = vrsqrt.pop %v70
    %v84 = vmul.f32 %v83, %v70
    %v85 = vmul.f32 %v84, %v83
    %v86 = vmul.f32 0.5, %v85
    %v87 = vsub.f32 1.5, %v86
    %v88 = vmul.f32 %v83, %v87
    %vm89 = vweird.f32 %v70
    %vm90 = vweird.f32 %v83
    %vm91 = vmor %vm89, %vm90
    %v92 = vsel %vm91, %v83, %v88
    %v93 = vrsqrt.pop %v71
    %v94 = vmul.f32 %v93, %v71
    %v95 = vmul.f32 %v94, %v93
    %v96 = vmul.f32 0.5, %v95
    %v97 = vsub.f32 1.5, %v96
    %v98 = vmul.f32 %v93, %v97
    %vm99 = vweird.f32 %v71
    %vm100 = vweird.f32 %v93
    %vm101 = vmor %vm99, %vm100
    %v102 = vsel %vm101, %v93, %v98
    %v103 = vrsqrt.pop %v72
    %v104 = vmul.f32 %v103, %v72
    %v105 = vmul.f32 %v104, %v103
    %v106 = vmul.f32 0.5, %v105
    %v107 = vsub.f32 1.5, %v106
    %v108 = vmul.f32 %v103, %v107
    %vm109 = vweird.f32 %v72
    %vm110 = vweird.f32 %v103
    %vm111 = vmor %vm109, %vm110
    %v112 = vsel %vm111, %v103, %v108
    %v113 = vmul.f32 %v42, %v82
    %v114 = vmul.f32 %v43, %v92
    %v115 = vmul.f32 %v44, %v102
    %v116 = vmul.f32 %v45, %v112
    %v117 = vld [vmem:[#allocation5] sm:$0x1]
    %v119 = vperm.slane %v117, 0
    %v121 = vmul.f32 %v119, %v113
    %v122 = vmul.f32 %v119, %v114
    %v123 = vmul.f32 %v119, %v115
    %v124 = vmul.f32 %v119, %v116
    %125 = vst [vmem:[#allocation7] sm:$0xff] %v121
    %126 = vst [vmem:[#allocation7 + $0x8] sm:$0xff] %v122
    %127 = vst [vmem:[#allocation7 + $0x10] sm:$0xff] %v123
    %128 = vst [vmem:[#allocation7 + $0x18] sm:$0xff] %v124
    // Predicated region
    $region18: #{tpu_custom_call.1} parent=1 // pred_check
      _
    $region19: #{tpu_custom_call.1} parent=1 // pred_check_branch
      %130 = sbr.rel (0) target = $region21
    $region20: #{tpu_custom_call.1} parent=1 // pred_region
      %132 = vsyncadd [#allocation4], 0
      %s133 = sshll.u32 [#allocation7], 4
      %s134 = int_to_ptr.vmem [resolvable:$true] %s133
      %s135 = sshll.u32 %s2, 4
      %s136 = int_to_ptr.hbm [resolvable:$true] %s135
      %141 = dma.vmem_to_hbm [thread:$0]  %s134, 512, %s136, [#allocation4], 128, 128, 8
    $region21: #{tpu_custom_call.1} parent=1 // pred_fallthru
      _
    // Predicated region
    $region22: #{tpu_custom_call.1} parent=1 // pred_check
      _
    $region23: #{tpu_custom_call.1} parent=1 // pred_check_branch
      %143 = sbr.rel (0) target = $region25
    $region24: #{tpu_custom_call.1} parent=1 // pred_region
      %145 = dma.done [#allocation4], 512
    $region25: #{tpu_custom_call.1} parent=1 // pred_fallthru
      _
    %146 = vsyncpa [#allocation3], 1
    %147 = vsyncpa [#allocation6], 1
    %148 = vsyncpa [#allocation4], 1

</llo_original>
